<compile_context>
chip_gen: v5e
topology: v5e:2x2
jax: 0.10.0
libtpu: 0.0.40
codegen_flags: <defaults>
</compile_context>

<pallas_src>
import jax
import jax.numpy as jnp
from jax.experimental import pallas as pl
from jax.experimental.pallas import tpu as pltpu


def _h_sigmoid_kernel(x_ref, o_ref):
    x = x_ref[...]
    # torch: relu6(x + 3) / 6  ==  clamp(x + 3, 0, 6) / 6
    o_ref[...] = (jnp.clip(x + 3.0, 0.0, 6.0) / 6.0).astype(o_ref.dtype)


def _generation_params():
    """Returns (vmem_limit_bytes, target_block_bytes) for this TPU generation."""
    vmem_cap = 0
    try:
        info = pltpu.get_tpu_info()
        vmem_cap = int(getattr(info, "vmem_capacity_bytes", 0) or 0)
    except Exception:
        vmem_cap = 0
    if vmem_cap >= 100 * 1024 * 1024:
        # v5e / v6e: 128 MiB physical VMEM -> bigger blocks, raised limit.
        # in + out, double-buffered = 4 x block = 24 MiB << 64 MiB.
        return 64 * 1024 * 1024, 6 * 1024 * 1024
    # v7x (64 MiB per TC) or unknown: stay conservative.
    # in + out, double-buffered = 4 x block = 16 MiB << 32 MiB.
    return 32 * 1024 * 1024, 4 * 1024 * 1024


def h_sigmoid(x: jax.Array, *, min_pallas_bytes: int = 256 * 1024,
              donate: bool = False) -> jax.Array:
    """Elementwise hard-sigmoid matching torch: relu6(x + 3) / 6."""
    orig_shape = x.shape
    orig_dtype = x.dtype
    total = x.size
    itemsize = jnp.dtype(orig_dtype).itemsize

    # Fallback to a single fused XLA elementwise pass when:
    #   * the tensor is tiny (pallas_call / pipeline setup cost dominates), or
    #   * total is not a multiple of 128 lanes (avoids the old pad + slice
    #     path, which added two full extra HBM passes).
    # Plain XLA does exactly one HBM read + write here, same as the kernel.
    if total == 0 or total % 128 != 0 or total * itemsize < min_pallas_bytes:
        return (jnp.clip(x + 3.0, 0.0, 6.0) / 6.0).astype(orig_dtype)

    vmem_limit_bytes, target_block_bytes = _generation_params()

    # Widest lane dim (multiple of 128) that divides `total` exactly: long
    # contiguous DMA bursts, fewer grid steps, zero padding.
    lanes = 128
    for cand in (2048, 1024, 512, 256, 128):
        if total % cand == 0:
            lanes = cand
            break
    rows = total // lanes
    x2d = x.reshape(rows, lanes)

    # Block rows: ~target_block_bytes per block, multiple of 32 sublanes
    # (covers f32 / bf16 / int8 packing), never bigger than the array.
    tm = (target_block_bytes // (lanes * itemsize)) // 32 * 32
    tm = max(tm, 32)
    tm = min(tm, rows)
    # Ensure >= 2 grid steps on big-enough tensors so the "parallel" grid axis
    # actually shards across both v7x TensorCores (harmless on v5e/v6e).
    if rows >= 64:
        tm = min(tm, ((pl.cdiv(rows, 2) + 31) // 32) * 32)

    grid = (pl.cdiv(rows, tm),)

    out2d = pl.pallas_call(
        _h_sigmoid_kernel,
        out_shape=jax.ShapeDtypeStruct((rows, lanes), orig_dtype),
        grid_spec=pltpu.PrefetchScalarGridSpec(
            num_scalar_prefetch=0,
            grid=grid,
            in_specs=[pl.BlockSpec((tm, lanes), lambda i: (i, 0))],
            out_specs=pl.BlockSpec((tm, lanes), lambda i: (i, 0)),
        ),
        compiler_params=pltpu.CompilerParams(
            dimension_semantics=("parallel",),
            vmem_limit_bytes=vmem_limit_bytes,
            allow_input_fusion=[True],
        ),
        input_output_aliases={0: 0} if donate else {},
    )(x2d)

    return out2d.reshape(orig_shape)


if __name__ == "__main__":
    key = jax.random.PRNGKey(0)
    # NCHW, same convention as the PyTorch module's expected conv inputs.
    x = jax.random.normal(key, (2, 4, 16, 16), dtype=jnp.float32) * 4.0
    ref = jnp.clip(x + 3.0, 0.0, 6.0) / 6.0

    # Default path: tiny input takes the fused-XLA fallback.
    out_default = jax.block_until_ready(h_sigmoid(x))
    assert out_default.shape == x.shape and out_default.dtype == x.dtype
    assert jnp.max(jnp.abs(out_default - ref)) < 1e-6

    # Force the Pallas kernel on the same small input.
    out_pallas = jax.block_until_ready(h_sigmoid(x, min_pallas_bytes=0))
    assert out_pallas.shape == x.shape and out_pallas.dtype == x.dtype
    assert jnp.max(jnp.abs(out_pallas - ref)) < 1e-6

    # Exercise the multi-block (grid >= 2, megacore-splittable) Pallas path.
    x2 = jax.random.normal(jax.random.PRNGKey(1), (2, 4, 128, 256),
                           dtype=jnp.float32) * 4.0
    ref2 = jnp.clip(x2 + 3.0, 0.0, 6.0) / 6.0
    out2 = jax.block_until_ready(h_sigmoid(x2))
    assert out2.shape == x2.shape and out2.dtype == x2.dtype
    assert jnp.max(jnp.abs(out2 - ref2)) < 1e-6

    print("KERNEL_OK")
</pallas_src>

<mosaic_0001>
module attributes {stable_mosaic.version = 11 : i64} {
  func.func @_h_sigmoid_kernel(%arg0: i32, %arg1: memref<1x2048xf32, #tpu.memory_space<vmem>>, %arg2: memref<1x2048xf32, #tpu.memory_space<vmem>>) attributes {dimension_semantics = [#tpu.dimension_semantics<parallel>], iteration_bounds = array<i64: 1>, scalar_prefetch = 0 : i64, scratch_operands = 0 : i64, tpu.core_type = #tpu.core_type<tc>, window_params = [{transform_indices = @transform_0, window_bounds = array<i64: 1, 2048>}, {transform_indices = @transform_1, window_bounds = array<i64: 1, 2048>}]} {
    %c0 = arith.constant 0 : index
    %c0_0 = arith.constant 0 : index
    %0 = vector.load %arg1[%c0, %c0_0] : memref<1x2048xf32, #tpu.memory_space<vmem>>, vector<1x2048xf32>
    %cst = arith.constant 3.000000e+00 : f32
    %1 = vector.broadcast %cst : f32 to vector<1x2048xf32>
    %2 = arith.addf %0, %1 : vector<1x2048xf32>
    %cst_1 = arith.constant 0.000000e+00 : f32
    %cst_2 = arith.constant 6.000000e+00 : f32
    %3 = vector.broadcast %cst_1 : f32 to vector<1x2048xf32>
    %4 = arith.maximumf %3, %2 : vector<1x2048xf32>
    %5 = vector.broadcast %cst_2 : f32 to vector<1x2048xf32>
    %6 = arith.minimumf %5, %4 : vector<1x2048xf32>
    %cst_3 = arith.constant 6.000000e+00 : f32
    %7 = vector.broadcast %cst_3 : f32 to vector<1x2048xf32>
    %8 = arith.divf %6, %7 : vector<1x2048xf32>
    %c0_4 = arith.constant 0 : index
    %c0_5 = arith.constant 0 : index
    %9 = vector.load %arg2[%c0_4, %c0_5] : memref<1x2048xf32, #tpu.memory_space<vmem>>, vector<1x2048xf32>
    tpu.vector_store %arg2[%c0_4, %c0_5], %8 {strides = array<i32>} : memref<1x2048xf32, #tpu.memory_space<vmem>>, vector<1x2048xf32>,
    return
  }
  func.func @transform_0(%arg0: i32) -> (i32, i32) {
    %c0_i32 = arith.constant 0 : i32
    %c0_i32_0 = arith.constant 0 : i32
    return %arg0, %c0_i32 : i32, i32
  }
  func.func @transform_1(%arg0: i32) -> (i32, i32) {
    %c0_i32 = arith.constant 0 : i32
    %c0_i32_0 = arith.constant 0 : i32
    return %arg0, %c0_i32 : i32, i32
  }
}

</mosaic_0001>

<llo_original>
// kernel: tpu_custom_call.1
$region0: #{tpu_custom_call.1}
  #allocation0 [shape = 'u32[]', space=smem, size = 0x4, offset = 0x4, fixed_abs, tag = 'smem constant byte address 0x4 - core index']
  #allocation1 [shape = 'u32[72,128]{1,0:T(1,128)}', space=vmem, size = 0x9000, scoped, tag = 'internal scratch']
  %s0 = inlined_call_operand.hbm [shape: f32[1,2048], index: 0, kind: input, shape index: {}]
  %s1 = inlined_call_operand.hbm [shape: f32[1,2048], index: 1, kind: output, shape index: {}]
  %s2 = sld [smem:[#allocation0]]
  $region18: #{tpu_custom_call.1} parent=0
    _
  %s4 = ssub.s32 1, %s2
  %s5 = scalar_select 0, %s4, %s2
  $region1: #{tpu_custom_call.1} parent=0
    #allocation2 [shape = 'u8[8192]{0}', space=vmem, size = 0x2000, scoped, tag = 'input window, operand 0, single buffered']
    #allocation3 [shape = 's32[1]{0}', space=sflag, size = 0x4, scoped, tag = 'scoped memory for tpu_custom_call.1']
    #allocation4 [shape = 's32[1]{0}', space=sflag, size = 0x4, scoped, tag = 'scoped memory for tpu_custom_call.1']
    #allocation5 [shape = 'u8[8192]{0}', space=vmem, size = 0x2000, scoped, tag = 'output window, operand 0, single buffered']
    %6 = vsyncpa [#allocation3], 0
    %7 = vsyncpa [#allocation4], 0
    // Predicated region
    $region2: #{tpu_custom_call.1} parent=1 // pred_check
      _
    $region3: #{tpu_custom_call.1} parent=1 // pred_check_branch
      %9 = sbr.rel (0) target = $region5
    $region4: #{tpu_custom_call.1} parent=1 // pred_region
      %11 = vsyncadd [#allocation3], 0
      %s13 = sshll.u32 %s0, 4
      %s14 = int_to_ptr.hbm [resolvable:$true] %s13
      %s15 = sshll.u32 [#allocation2], 4
      %s16 = int_to_ptr.vmem [resolvable:$true] %s15
      %18 = dma.hbm_to_vmem [thread:$0]  %s14, 256, %s16, [#allocation3]
    $region5: #{tpu_custom_call.1} parent=1 // pred_fallthru
      _
    // Predicated region
    $region6: #{tpu_custom_call.1} parent=1 // pred_check
      _
    $region7: #{tpu_custom_call.1} parent=1 // pred_check_branch
      %20 = sbr.rel (0) target = $region9
    $region8: #{tpu_custom_call.1} parent=1 // pred_region
      %22 = dma.done [#allocation3], 256
    $region9: #{tpu_custom_call.1} parent=1 // pred_fallthru
      _
    %v23 = vld [vmem:[#allocation2] sm:$0xff]
    %v24 = vld [vmem:[#allocation2 + $0x8] sm:$0xff]
    %v25 = vadd.f32 %v23, 3.0
    %v26 = vadd.f32 %v24, 3.0
    %v27 = vmax.f32 %v25, 0.0
    %v28 = vmax.f32 %v26, 0.0
    %v29 = vmin.f32 %v27, 6.0
    %v30 = vmin.f32 %v28, 6.0
    %v31 = vrcp.pop 6.0
    %v32 = vmul.f32 6.0, %v31
    %v33 = vsub.f32 1.0, %v32
    %v34 = vmul.f32 %v31, %v33
    %v35 = vadd.f32 %v31, %v34
    %vm36 = vweird.f32 %v31
    %v37 = vsel %vm36, %v31, %v35
    %v38 = vmul.f32 %v29, %v37
    %v39 = vmul.f32 %v30, %v37
    %40 = vst [vmem:[#allocation5] sm:$0xff] %v38
    %41 = vst [vmem:[#allocation5 + $0x8] sm:$0xff] %v39
    // Predicated region
    $region10: #{tpu_custom_call.1} parent=1 // pred_check
      _
    $region11: #{tpu_custom_call.1} parent=1 // pred_check_branch
      %43 = sbr.rel (0) target = $region13
    $region12: #{tpu_custom_call.1} parent=1 // pred_region
      %45 = vsyncadd [#allocation4], 0
      %s47 = sshll.u32 [#allocation5], 4
      %s48 = int_to_ptr.vmem [resolvable:$true] %s47
      %s49 = sshll.u32 %s1, 4
      %s50 = int_to_ptr.hbm [resolvable:$true] %s49
      %52 = dma.vmem_to_hbm [thread:$0]  %s48, 256, %s50, [#allocation4]
    $region13: #{tpu_custom_call.1} parent=1 // pred_fallthru
      _
    // Predicated region
    $region14: #{tpu_custom_call.1} parent=1 // pred_check
      _
    $region15: #{tpu_custom_call.1} parent=1 // pred_check_branch
      %54 = sbr.rel (0) target = $region17
    $region16: #{tpu_custom_call.1} parent=1 // pred_region
      %56 = dma.done [#allocation4], 256
    $region17: #{tpu_custom_call.1} parent=1 // pred_fallthru
      _
    %57 = vsyncpa [#allocation3], 1
    %58 = vsyncpa [#allocation4], 1

</llo_original>
